<compile_context>
chip_gen: v7x
topology: tpu7x:2x2x1
jax: 0.10.0
libtpu: 0.0.40
codegen_flags: <defaults>
</compile_context>

<pallas_src>
import jax
import jax.numpy as jnp
from jax.experimental import pallas as pl
from jax.experimental.pallas import tpu as pltpu


def _round_up(n, m):
    return ((n + m - 1) // m) * m


def _make_kernel(K, c_in, l_out, lp, sb, nsub, c_out_p):
    """Build the kernel body with all static tiling parameters baked in."""

    def kernel(x_ref, w_ref, b_ref, o_ref):
        # x_ref: (TB, L_x, C_in)    channel-last input block (time zero-padded to lp+K-1)
        # w_ref: (K, C_in, C_out_p) folded conv weight (resident every step)
        # b_ref: (1, C_out_p)       bias, f32 (resident)
        # o_ref: (TB, C_out_p)      output block, f32
        bias = b_ref[...]
        for s in range(nsub):                      # static unrolled sub-chunk loop
            r0 = s * sb
            xs = x_ref[r0:r0 + sb, :, :]           # (sb, L_x, C_in)
            acc = None
            for k in range(K):                     # K shifted tap-GEMMs on the MXU
                xk = xs[:, k:k + lp, :].reshape(sb * lp, c_in)
                d = jnp.dot(xk, w_ref[k], preferred_element_type=jnp.float32)
                acc = d if acc is None else acc + d
            conv = acc.reshape(sb, lp, c_out_p)    # (sb, lp, C_out_p) f32
            if lp != l_out:
                # Mask conv rows that used zero-padded time steps before the max.
                t_idx = jax.lax.broadcasted_iota(jnp.int32, conv.shape, 1)
                conv = jnp.where(t_idx < l_out, conv, -3.0e38)
            m = jnp.max(conv, axis=1)              # (sb, C_out_p)  max over time
            # Bias + ReLU after the max (exact; see header comment).
            o_ref[r0:r0 + sb, :] = jnp.maximum(m + bias, 0.0).astype(o_ref.dtype)

    return kernel


def cnn_forward(x, weight, bias, kernel_size, *,
                compute_dtype=jnp.bfloat16, tb_max=512,
                stream_budget_bytes=24 << 20):
    """x: (B, C_in, L) f32; weight: (C_out, C_in, K); bias: (C_out,) -> (B, C_out) f32."""
    B, c_in, L = x.shape
    c_out = weight.shape[0]
    K = kernel_size
    l_out = L - K + 1
    assert l_out >= 1, "seq_length must be >= kernel_size"

    lp = _round_up(l_out, 8)            # conv-time rows per batch element (sublane aligned)
    L_x = lp + K - 1                    # padded input time so every tap slice has lp rows
    c_out_p = _round_up(c_out, 128)     # lane-dense output channels

    # ---- choose batch block TB from an explicit, lane-padded VMEM budget ---------------
    itemsize = jnp.dtype(compute_dtype).itemsize
    per_row = (2 * _round_up(L_x, 16) * _round_up(c_in, 128) * itemsize   # x (2 bufs)
               + 2 * c_out_p * 4)                                         # out f32 (2 bufs)
    bp8 = _round_up(B, 8)
    tb = max(8, (stream_budget_bytes // per_row) // 8 * 8)
    tb = min(tb, tb_max, bp8)
    # v7x has 2 TensorCores: prefer >= 2 parallel grid steps when the batch allows it.
    if bp8 >= 16 and tb > bp8 // 2:
        tb = max(8, _round_up(bp8 // 2, 8))
    bp = _round_up(B, tb)

    # ---- bound the f32 conv intermediate with an in-kernel sub-chunk loop --------------
    sb = 8
    for s in (256, 128, 64, 32, 16, 8):
        if tb % s == 0 and s * lp * c_out_p * 4 <= (2 << 20):
            sb = s
            break
    nsub = tb // sb

    # ---- wrapper-side layout (one-time, HBM-minimal) ------------------------------------
    # channel-last x, zero-padded in time (to L_x) and batch (to bp)
    x_t = jnp.pad(jnp.transpose(x, (0, 2, 1)).astype(compute_dtype),
                  ((0, bp - B), (0, L_x - L), (0, 0)))                    # (bp, L_x, C_in)
    # folded weight w3[k, c, o] = weight[o, c, k], zero-padded to c_out_p lanes
    w3 = jnp.pad(jnp.transpose(weight, (2, 1, 0)).astype(compute_dtype),
                 ((0, 0), (0, 0), (0, c_out_p - c_out)))                  # (K, C_in, C_out_p)
    b2 = jnp.pad(bias.astype(jnp.float32).reshape(1, c_out),
                 ((0, 0), (0, c_out_p - c_out)))                          # (1, C_out_p)

    # ---- explicit VMEM accounting -> vmem_limit_bytes (fits v7x's 64 MiB physical) ------
    est = (tb * per_row                                                # x + out streams
           + 2 * K * _round_up(c_in, 16) * c_out_p * itemsize          # resident weight
           + 3 * sb * lp * c_out_p * 4)                                # acc + tap temporaries
    vmem_limit = int(min(48 << 20, max(32 << 20, 2 * est)))

    kernel = _make_kernel(K, c_in, l_out, lp, sb, nsub, c_out_p)
    out = pl.pallas_call(
        kernel,
        out_shape=jax.ShapeDtypeStruct((bp, c_out_p), jnp.float32),
        grid=(bp // tb,),
        in_specs=[
            pl.BlockSpec((tb, L_x, c_in), lambda i: (i, 0, 0)),      # x block (streamed)
            pl.BlockSpec((K, c_in, c_out_p), lambda i: (0, 0, 0)),   # weight (resident)
            pl.BlockSpec((1, c_out_p), lambda i: (0, 0)),            # bias (resident)
        ],
        out_specs=pl.BlockSpec((tb, c_out_p), lambda i: (i, 0)),
        compiler_params=pltpu.CompilerParams(
            dimension_semantics=("parallel",),      # batch blocks shard across TCs (v7x)
            vmem_limit_bytes=vmem_limit),
    )(x_t, w3, b2)

    # drop batch / output-channel padding
    return out[:B, :c_out].astype(x.dtype)


def cnn_reference(x, weight, bias, kernel_size):
    """Pure-JAX reference replicating torch semantics exactly."""
    B, c_in, L = x.shape
    l_out = L - kernel_size + 1
    patches = jnp.stack([x[:, :, k:k + l_out] for k in range(kernel_size)], axis=-1)
    conv = jnp.einsum("bclk,ock->bol", patches, weight) + bias[None, :, None]
    conv = jnp.maximum(conv, 0.0)
    return jnp.max(conv, axis=2)


if __name__ == "__main__":
    # Module hyperparameters (small, consistent with the forward contract).
    char_embed_size = 4     # C_in
    word_embed_size = 32    # C_out
    kernel_size = 5
    batch = 2
    seq_length = 16

    key = jax.random.PRNGKey(0)
    kx, kw, kb = jax.random.split(key, 3)

    x = jax.random.normal(kx, (batch, char_embed_size, seq_length), dtype=jnp.float32)

    # Deterministic parameter init mimicking nn.Conv1d's default uniform bound.
    fan_in = char_embed_size * kernel_size
    bound = 1.0 / (fan_in ** 0.5)
    weight = jax.random.uniform(kw, (word_embed_size, char_embed_size, kernel_size),
                                minval=-bound, maxval=bound, dtype=jnp.float32)
    bias = jax.random.uniform(kb, (word_embed_size,),
                              minval=-bound, maxval=bound, dtype=jnp.float32)

    ref = cnn_reference(x, weight, bias, kernel_size)

    # Exact-precision path (f32 streams): bit-level check vs the reference.
    out_f32 = jax.block_until_ready(
        cnn_forward(x, weight, bias, kernel_size, compute_dtype=jnp.float32))
    assert out_f32.shape == (batch, word_embed_size), out_f32.shape
    assert jnp.allclose(out_f32, ref, atol=1e-5, rtol=1e-5), "f32 mismatch vs reference"

    # Default fast path (bf16 streams, f32 accumulation): loose-tolerance check.
    out_bf16 = jax.block_until_ready(
        cnn_forward(x, weight, bias, kernel_size, compute_dtype=jnp.bfloat16))
    assert out_bf16.shape == (batch, word_embed_size), out_bf16.shape
    assert jnp.allclose(out_bf16, ref, atol=5e-2, rtol=5e-2), "bf16 mismatch vs reference"

    print("KERNEL_OK")
</pallas_src>

<mosaic_0001>
module attributes {stable_mosaic.version = 11 : i64} {
  func.func @kernel(%arg0: i32, %arg1: memref<8x20x4xf32, #tpu.memory_space<vmem>>, %arg2: memref<5x4x128xf32, #tpu.memory_space<vmem>>, %arg3: memref<1x128xf32, #tpu.memory_space<vmem>>, %arg4: memref<8x128xf32, #tpu.memory_space<vmem>>) attributes {dimension_semantics = [#tpu.dimension_semantics<parallel>], iteration_bounds = array<i64: 1>, scalar_prefetch = 0 : i64, scratch_operands = 0 : i64, tpu.core_type = #tpu.core_type<tc>, window_params = [{transform_indices = @transform_0, window_bounds = array<i64: 8, 20, 4>}, {pipeline_mode = #tpu.pipeline_mode<synchronous>, transform_indices = @transform_1, window_bounds = array<i64: 5, 4, 128>}, {pipeline_mode = #tpu.pipeline_mode<synchronous>, transform_indices = @transform_2, window_bounds = array<i64: 1, 128>}, {transform_indices = @transform_3, window_bounds = array<i64: 8, 128>}]} {
    %c0 = arith.constant 0 : index
    %c0_0 = arith.constant 0 : index
    %0 = vector.load %arg3[%c0, %c0_0] : memref<1x128xf32, #tpu.memory_space<vmem>>, vector<1x128xf32>
    %c0_1 = arith.constant 0 : index
    %c0_2 = arith.constant 0 : index
    %c0_3 = arith.constant 0 : index
    %1 = vector.load %arg1[%c0_1, %c0_2, %c0_3] : memref<8x20x4xf32, #tpu.memory_space<vmem>>, vector<8x20x4xf32>
    %2 = vector.extract_strided_slice %1 {offsets = [0, 0, 0], sizes = [8, 16, 4], strides = [1, 1, 1]} : vector<8x20x4xf32> to vector<8x16x4xf32>
    %3 = vector.shape_cast %2 : vector<8x16x4xf32> to vector<128x4xf32>
    %c0_4 = arith.constant 0 : index
    %c0_5 = arith.constant 0 : index
    %c0_6 = arith.constant 0 : index
    %4 = vector.load %arg2[%c0_4, %c0_5, %c0_6] : memref<5x4x128xf32, #tpu.memory_space<vmem>>, vector<1x4x128xf32>
    %5 = vector.shape_cast %4 : vector<1x4x128xf32> to vector<4x128xf32>
    %cst = arith.constant dense<0.000000e+00> : vector<128x128xf32>
    %6 = tpu.matmul %3, %5, %cst {dimension_numbers = #tpu.dot_dimension_numbers<[1], [0], [0], [1], [0, 0, 1, 1], [], []>} : vector<128x4xf32>, vector<4x128xf32>, vector<128x128xf32> -> vector<128x128xf32>
    %7 = vector.extract_strided_slice %1 {offsets = [0, 1, 0], sizes = [8, 16, 4], strides = [1, 1, 1]} : vector<8x20x4xf32> to vector<8x16x4xf32>
    %8 = vector.shape_cast %7 : vector<8x16x4xf32> to vector<128x4xf32>
    %c1 = arith.constant 1 : index
    %c0_7 = arith.constant 0 : index
    %c0_8 = arith.constant 0 : index
    %9 = vector.load %arg2[%c1, %c0_7, %c0_8] : memref<5x4x128xf32, #tpu.memory_space<vmem>>, vector<1x4x128xf32>
    %10 = vector.shape_cast %9 : vector<1x4x128xf32> to vector<4x128xf32>
    %cst_9 = arith.constant dense<0.000000e+00> : vector<128x128xf32>
    %11 = tpu.matmul %8, %10, %cst_9 {dimension_numbers = #tpu.dot_dimension_numbers<[1], [0], [0], [1], [0, 0, 1, 1], [], []>} : vector<128x4xf32>, vector<4x128xf32>, vector<128x128xf32> -> vector<128x128xf32>
    %12 = arith.addf %6, %11 : vector<128x128xf32>
    %13 = vector.extract_strided_slice %1 {offsets = [0, 2, 0], sizes = [8, 16, 4], strides = [1, 1, 1]} : vector<8x20x4xf32> to vector<8x16x4xf32>
    %14 = vector.shape_cast %13 : vector<8x16x4xf32> to vector<128x4xf32>
    %c2 = arith.constant 2 : index
    %c0_10 = arith.constant 0 : index
    %c0_11 = arith.constant 0 : index
    %15 = vector.load %arg2[%c2, %c0_10, %c0_11] : memref<5x4x128xf32, #tpu.memory_space<vmem>>, vector<1x4x128xf32>
    %16 = vector.shape_cast %15 : vector<1x4x128xf32> to vector<4x128xf32>
    %cst_12 = arith.constant dense<0.000000e+00> : vector<128x128xf32>
    %17 = tpu.matmul %14, %16, %cst_12 {dimension_numbers = #tpu.dot_dimension_numbers<[1], [0], [0], [1], [0, 0, 1, 1], [], []>} : vector<128x4xf32>, vector<4x128xf32>, vector<128x128xf32> -> vector<128x128xf32>
    %18 = arith.addf %12, %17 : vector<128x128xf32>
    %19 = vector.extract_strided_slice %1 {offsets = [0, 3, 0], sizes = [8, 16, 4], strides = [1, 1, 1]} : vector<8x20x4xf32> to vector<8x16x4xf32>
    %20 = vector.shape_cast %19 : vector<8x16x4xf32> to vector<128x4xf32>
    %c3 = arith.constant 3 : index
    %c0_13 = arith.constant 0 : index
    %c0_14 = arith.constant 0 : index
    %21 = vector.load %arg2[%c3, %c0_13, %c0_14] : memref<5x4x128xf32, #tpu.memory_space<vmem>>, vector<1x4x128xf32>
    %22 = vector.shape_cast %21 : vector<1x4x128xf32> to vector<4x128xf32>
    %cst_15 = arith.constant dense<0.000000e+00> : vector<128x128xf32>
    %23 = tpu.matmul %20, %22, %cst_15 {dimension_numbers = #tpu.dot_dimension_numbers<[1], [0], [0], [1], [0, 0, 1, 1], [], []>} : vector<128x4xf32>, vector<4x128xf32>, vector<128x128xf32> -> vector<128x128xf32>
    %24 = arith.addf %18, %23 : vector<128x128xf32>
    %25 = vector.extract_strided_slice %1 {offsets = [0, 4, 0], sizes = [8, 16, 4], strides = [1, 1, 1]} : vector<8x20x4xf32> to vector<8x16x4xf32>
    %26 = vector.shape_cast %25 : vector<8x16x4xf32> to vector<128x4xf32>
    %c4 = arith.constant 4 : index
    %c0_16 = arith.constant 0 : index
    %c0_17 = arith.constant 0 : index
    %27 = vector.load %arg2[%c4, %c0_16, %c0_17] : memref<5x4x128xf32, #tpu.memory_space<vmem>>, vector<1x4x128xf32>
    %28 = vector.shape_cast %27 : vector<1x4x128xf32> to vector<4x128xf32>
    %cst_18 = arith.constant dense<0.000000e+00> : vector<128x128xf32>
    %29 = tpu.matmul %26, %28, %cst_18 {dimension_numbers = #tpu.dot_dimension_numbers<[1], [0], [0], [1], [0, 0, 1, 1], [], []>} : vector<128x4xf32>, vector<4x128xf32>, vector<128x128xf32> -> vector<128x128xf32>
    %30 = arith.addf %24, %29 : vector<128x128xf32>
    %31 = vector.shape_cast %30 : vector<128x128xf32> to vector<8x16x128xf32>
    %32 = tpu.iota {dimensions = array<i32: 1>} : vector<8x16x128xi32>
    %c12_i32 = arith.constant 12 : i32
    %33 = vector.broadcast %c12_i32 : i32 to vector<8x16x128xi32>
    %34 = arith.cmpi slt, %32, %33 : vector<8x16x128xi32>
    %cst_19 = arith.constant -3.000000e+38 : f32
    %35 = vector.broadcast %cst_19 : f32 to vector<8x16x128xf32>
    %36 = arith.select %34, %31, %35 : vector<8x16x128xi1>, vector<8x16x128xf32>
    %cst_20 = arith.constant dense<0xFF800000> : vector<8x128xf32>
    %37 = vector.multi_reduction <maximumf>, %36, %cst_20 [1] : vector<8x16x128xf32> to vector<8x128xf32>
    %38 = vector.broadcast %0 : vector<1x128xf32> to vector<8x128xf32>
    %39 = arith.addf %37, %38 : vector<8x128xf32>
    %cst_21 = arith.constant 0.000000e+00 : f32
    %40 = vector.broadcast %cst_21 : f32 to vector<8x128xf32>
    %41 = arith.maximumf %39, %40 : vector<8x128xf32>
    %c0_22 = arith.constant 0 : index
    %c0_23 = arith.constant 0 : index
    %42 = vector.load %arg4[%c0_22, %c0_23] : memref<8x128xf32, #tpu.memory_space<vmem>>, vector<8x128xf32>
    tpu.vector_store %arg4[%c0_22, %c0_23], %41 {strides = array<i32>} : memref<8x128xf32, #tpu.memory_space<vmem>>, vector<8x128xf32>,
    return
  }
  func.func @transform_0(%arg0: i32) -> (i32, i32, i32) {
    %c0_i32 = arith.constant 0 : i32
    %c0_i32_0 = arith.constant 0 : i32
    %c0_i32_1 = arith.constant 0 : i32
    return %arg0, %c0_i32, %c0_i32_0 : i32, i32, i32
  }
  func.func @transform_1(%arg0: i32) -> (i32, i32, i32) {
    %c0_i32 = arith.constant 0 : i32
    %c0_i32_0 = arith.constant 0 : i32
    %c0_i32_1 = arith.constant 0 : i32
    %c0_i32_2 = arith.constant 0 : i32
    return %c0_i32, %c0_i32_0, %c0_i32_1 : i32, i32, i32
  }
  func.func @transform_2(%arg0: i32) -> (i32, i32) {
    %c0_i32 = arith.constant 0 : i32
    %c0_i32_0 = arith.constant 0 : i32
    %c0_i32_1 = arith.constant 0 : i32
    return %c0_i32, %c0_i32_0 : i32, i32
  }
  func.func @transform_3(%arg0: i32) -> (i32, i32) {
    %c0_i32 = arith.constant 0 : i32
    %c0_i32_0 = arith.constant 0 : i32
    return %arg0, %c0_i32 : i32, i32
  }
}

</mosaic_0001>

<llo_original>
// kernel: tpu_custom_call.1
$region0: #{tpu_custom_call.1}
  #allocation0 [shape = 'u32[]', space=smem, size = 0x4, offset = 0x4, fixed_abs, tag = 'smem constant byte address 0x4 - core index']
  #allocation1 [shape = 'u32[144,128]{1,0:T(1,128)}', space=vmem, size = 0x12000, scoped, tag = 'internal scratch']
  %s0 = inlined_call_operand.vmem [shape: f32[8,20,4], index: 0, kind: input, shape index: {}]
  %s1 = inlined_call_operand.vmem [shape: f32[5,4,128], index: 1, kind: input, shape index: {}]
  %s2 = inlined_call_operand.vmem [shape: f32[1,128], index: 2, kind: input, shape index: {}]
  %s3 = inlined_call_operand.hbm [shape: f32[8,128], index: 3, kind: output, shape index: {}]
  %s4 = sld [smem:[#allocation0]]
  $region22: #{tpu_custom_call.1} parent=0
    _
  %s6 = ssub.s32 1, %s4
  %s7 = scalar_select 0, %s6, %s4
  $region1: #{tpu_custom_call.1} parent=0
    #allocation2 [shape = 'u8[4096]{0}', space=vmem, size = 0x1000, scoped, tag = 'output window, operand 0, single buffered']
    #allocation3 [shape = 's32[1]{0}', space=sflag, size = 0x4, scoped, tag = 'scoped memory for tpu_custom_call.1']
    %8 = vsyncpa [#allocation3], 0
    // Predicated region
    $region2: #{tpu_custom_call.1} parent=1 // pred_check
      _
    $region3: #{tpu_custom_call.1} parent=1 // pred_check_branch
      %10 = sbr.rel (0) target = $region5
    $region4: #{tpu_custom_call.1} parent=1 // pred_region
      _
    $region5: #{tpu_custom_call.1} parent=1 // pred_fallthru
      _
    // Predicated region
    $region6: #{tpu_custom_call.1} parent=1 // pred_check
      _
    $region7: #{tpu_custom_call.1} parent=1 // pred_check_branch
      %12 = sbr.rel (0) target = $region9
    $region8: #{tpu_custom_call.1} parent=1 // pred_region
      _
    $region9: #{tpu_custom_call.1} parent=1 // pred_fallthru
      _
    // Predicated region
    $region10: #{tpu_custom_call.1} parent=1 // pred_check
      _
    $region11: #{tpu_custom_call.1} parent=1 // pred_check_branch
      %14 = sbr.rel (0) target = $region13
    $region12: #{tpu_custom_call.1} parent=1 // pred_region
      _
    $region13: #{tpu_custom_call.1} parent=1 // pred_fallthru
      _
    %v15 = vld [vmem:[%s2] sm:$0x1]
    %v16 = vld [vmem:[%s0] sm:$0xff]
    %v17 = vld [vmem:[%s0 + $0x8] sm:$0xff]
    %v18 = vld [vmem:[%s0 + $0x10] sm:$0xf]
    %v19 = vld [vmem:[%s0 + $0x18] sm:$0xff]
    %v20 = vld [vmem:[%s0 + $0x20] sm:$0xff]
    %v21 = vld [vmem:[%s0 + $0x28] sm:$0xf]
    %v22 = vld [vmem:[%s0 + $0x30] sm:$0xff]
    %v23 = vld [vmem:[%s0 + $0x38] sm:$0xff]
    %v24 = vld [vmem:[%s0 + $0x40] sm:$0xf]
    %v25 = vld [vmem:[%s0 + $0x48] sm:$0xff]
    %v26 = vld [vmem:[%s0 + $0x50] sm:$0xff]
    %v27 = vld [vmem:[%s0 + $0x58] sm:$0xf]
    %v28 = vld [vmem:[%s0 + $0x60] sm:$0xff]
    %v29 = vld [vmem:[%s0 + $0x68] sm:$0xff]
    %v30 = vld [vmem:[%s0 + $0x70] sm:$0xf]
    %v31 = vld [vmem:[%s0 + $0x78] sm:$0xff]
    %v32 = vld [vmem:[%s0 + $0x80] sm:$0xff]
    %v33 = vld [vmem:[%s0 + $0x88] sm:$0xf]
    %v34 = vld [vmem:[%s0 + $0x90] sm:$0xff]
    %v35 = vld [vmem:[%s0 + $0x98] sm:$0xff]
    %v36 = vld [vmem:[%s0 + $0xa0] sm:$0xf]
    %v37 = vld [vmem:[%s0 + $0xa8] sm:$0xff]
    %v38 = vld [vmem:[%s0 + $0xb0] sm:$0xff]
    %v39 = vld [vmem:[%s0 + $0xb8] sm:$0xf]
    %v40 = vld [vmem:[%s1] sm:$0xf]
    %vm65 = vcmask 1046528
    %v66 = vrot.slane %v16, 1
    %v67 = vrot.slane %v17, 1
    %v68 = vsel %vm65, %v66, %v67
    %v69 = vrot.slane %v18, 1
    %v70 = vsel %vm65, %v67, %v69
    %v71 = vrot.slane %v19, 1
    %v72 = vrot.slane %v20, 1
    %v73 = vsel %vm65, %v71, %v72
    %v74 = vrot.slane %v21, 1
    %v75 = vsel %vm65, %v72, %v74
    %v76 = vrot.slane %v22, 1
    %v77 = vrot.slane %v23, 1
    %v78 = vsel %vm65, %v76, %v77
    %v79 = vrot.slane %v24, 1
    %v80 = vsel %vm65, %v77, %v79
    %v81 = vrot.slane %v25, 1
    %v82 = vrot.slane %v26, 1
    %v83 = vsel %vm65, %v81, %v82
    %v84 = vrot.slane %v27, 1
    %v85 = vsel %vm65, %v82, %v84
    %v86 = vrot.slane %v28, 1
    %v87 = vrot.slane %v29, 1
    %v88 = vsel %vm65, %v86, %v87
    %v89 = vrot.slane %v30, 1
    %v90 = vsel %vm65, %v87, %v89
    %v91 = vrot.slane %v31, 1
    %v92 = vrot.slane %v32, 1
    %v93 = vsel %vm65, %v91, %v92
    %v94 = vrot.slane %v33, 1
    %v95 = vsel %vm65, %v92, %v94
    %v96 = vrot.slane %v34, 1
    %v97 = vrot.slane %v35, 1
    %v98 = vsel %vm65, %v96, %v97
    %v99 = vrot.slane %v36, 1
    %v100 = vsel %vm65, %v97, %v99
    %v101 = vrot.slane %v37, 1
    %v102 = vrot.slane %v38, 1
    %v103 = vsel %vm65, %v101, %v102
    %v104 = vrot.slane %v39, 1
    %v105 = vsel %vm65, %v102, %v104
    %s106 = scalar_lea.vmem %s1, 4
    %v107 = vld [vmem:[%s106] sm:$0xf]
    %vm108 = vcmask 31744
    %v109 = vsel %vm108, %v68, 0
    %v111 = vsel %vm108, %v70, 0
    %v113 = vsel %vm108, %v73, 0
    %v115 = vsel %vm108, %v75, 0
    %v117 = vsel %vm108, %v78, 0
    %v119 = vsel %vm108, %v80, 0
    %v121 = vsel %vm108, %v83, 0
    %v123 = vsel %vm108, %v85, 0
    %v125 = vsel %vm108, %v88, 0
    %v127 = vsel %vm108, %v90, 0
    %v129 = vsel %vm108, %v93, 0
    %v131 = vsel %vm108, %v95, 0
    %v133 = vsel %vm108, %v98, 0
    %v135 = vsel %vm108, %v100, 0
    %v137 = vsel %vm108, %v103, 0
    %v139 = vsel %vm108, %v105, 0
    %vm141 = vcmask 1043456
    %v143 = vsel %vm141, %v107, 0
    %145 = vmatprep.subr.mxu0 0.0
    %146 = vmatpush1.msra.mxu0 %v143
    %147 = vmatprep.subr.mxu0 0.0
    %148 = vmatpush1.msra.mxu0 0.0
    %149 = vmatprep.subr.mxu0 0.0
    %150 = vmatpush1.msra.mxu0 0.0
    %151 = vmatprep.subr.mxu0 0.0
    %152 = vmatpush1.msra.mxu0 0.0
    %153 = vmatprep.subr.mxu0 0.0
    %154 = vmatpush1.msra.mxu0 0.0
    %155 = vmatprep.subr.mxu0 0.0
    %156 = vmatpush1.msra.mxu0 0.0
    %157 = vmatprep.subr.mxu0 0.0
    %158 = vmatpush1.msra.mxu0 0.0
    %159 = vmatprep.subr.mxu0 0.0
    %160 = vmatpush1.msra.mxu0 0.0
    %161 = vmatprep.subr.mxu0 0.0
    %162 = vmatpush1.msra.mxu0 0.0
    %163 = vmatprep.subr.mxu0 0.0
    %164 = vmatpush1.msra.mxu0 0.0
    %165 = vmatprep.subr.mxu0 0.0
    %166 = vmatpush1.msra.mxu0 0.0
    %167 = vmatprep.subr.mxu0 0.0
    %168 = vmatpush1.msra.mxu0 0.0
    %169 = vmatprep.subr.mxu0 0.0
    %170 = vmatpush1.msra.mxu0 0.0
    %171 = vmatprep.subr.mxu0 0.0
    %172 = vmatpush1.msra.mxu0 0.0
    %173 = vmatprep.subr.mxu0 0.0
    %174 = vmatpush1.msra.mxu0 0.0
    %175 = vmatprep.subr.mxu0 0.0
    %176 = vmatpush1.msra.mxu0 0.0
    %177 = vmatprep.subr.mxu0 0.0
    %178 = vmatpush1.msra.mxu0 0.0
    %179 = vmatprep.subr.mxu0 0.0
    %180 = vmatpush1.msra.mxu0 0.0
    %181 = vmatprep.subr.mxu0 0.0
    %182 = vmatpush1.msra.mxu0 0.0
    %183 = vmatprep.subr.mxu0 0.0
    %184 = vmatpush1.msra.mxu0 0.0
    %185 = vmatprep.subr.mxu0 0.0
    %186 = vmatpush1.msra.mxu0 0.0
    %187 = vmatprep.subr.mxu0 0.0
    %188 = vmatpush1.msra.mxu0 0.0
    %189 = vmatprep.subr.mxu0 0.0
    %190 = vmatpush1.msra.mxu0 0.0
    %191 = vmatprep.subr.mxu0 0.0
    %192 = vmatpush1.msra.mxu0 0.0
    %193 = vmatprep.subr.mxu0 0.0
    %194 = vmatpush1.msra.mxu0 0.0
    %195 = vmatprep.subr.mxu0 0.0
    %196 = vmatpush1.msra.mxu0 0.0
    %197 = vmatprep.subr.mxu0 0.0
    %198 = vmatpush1.msra.mxu0 0.0
    %199 = vmatprep.subr.mxu0 0.0
    %200 = vmatpush1.msra.mxu0 0.0
    %201 = vmatprep.subr.mxu0 0.0
    %202 = vmatpush1.msra.mxu0 0.0
    %203 = vmatprep.subr.mxu0 0.0
    %204 = vmatpush1.msra.mxu0 0.0
    %205 = vmatprep.subr.mxu0 0.0
    %206 = vmatpush1.msra.mxu0 0.0
    %207 = vmatprep.subr.mxu0 0.0
    %208 = vmatpush1.msra.mxu0 0.0
    %209 = vmatprep.mubr.f32.mxu0 0.0
    %210 = vmatmul.mubr.f32.gmra.mrb[0].mxu0 %v109
    %v211 = vpop.f32.mrb[0].mxu0
    %v212 = vadd.f32 0.0, %v211
    %v213 = vpop.f32.mrb[0].mxu0
    %214 = vmatprep.mubr.f32.mxu0 0.0
    %215 = vmatmul.mubr.f32.gmra.mrb[0].mxu0 %v111
    %v216 = vpop.f32.mrb[0].mxu0
    %v217 = vadd.f32 0.0, %v216
    %v218 = vpop.f32.mrb[0].mxu0
    %219 = vmatprep.mubr.f32.mxu0 0.0
    %220 = vmatmul.mubr.f32.gmra.mrb[0].mxu0 %v113
    %v221 = vpop.f32.mrb[0].mxu0
    %v222 = vadd.f32 0.0, %v221
    %v223 = vpop.f32.mrb[0].mxu0
    %224 = vmatprep.mubr.f32.mxu0 0.0
    %225 = vmatmul.mubr.f32.gmra.mrb[0].mxu0 %v115
    %v226 = vpop.f32.mrb[0].mxu0
    %v227 = vadd.f32 0.0, %v226
    %v228 = vpop.f32.mrb[0].mxu0
    %229 = vmatprep.mubr.f32.mxu0 0.0
    %230 = vmatmul.mubr.f32.gmra.mrb[0].mxu0 %v117
    %v231 = vpop.f32.mrb[0].mxu0
    %v232 = vadd.f32 0.0, %v231
    %v233 = vpop.f32.mrb[0].mxu0
    %234 = vmatprep.mubr.f32.mxu0 0.0
    %235 = vmatmul.mubr.f32.gmra.mrb[0].mxu0 %v119
    %v236 = vpop.f32.mrb[0].mxu0
    %v237 = vadd.f32 0.0, %v236
    %v238 = vpop.f32.mrb[0].mxu0
    %239 = vmatprep.mubr.f32.mxu0 0.0
    %240 = vmatmul.mubr.f32.gmra.mrb[0].mxu0 %v121
    %v241 = vpop.f32.mrb[0].mxu0
    %v242 = vadd.f32 0.0, %v241
    %v243 = vpop.f32.mrb[0].mxu0
    %244 = vmatprep.mubr.f32.mxu0 0.0
    %245 = vmatmul.mubr.f32.gmra.mrb[0].mxu0 %v123
    %v246 = vpop.f32.mrb[0].mxu0
    %v247 = vadd.f32 0.0, %v246
    %v248 = vpop.f32.mrb[0].mxu0
    %249 = vmatprep.mubr.f32.mxu0 0.0
    %250 = vmatmul.mubr.f32.gmra.mrb[0].mxu0 %v125
    %v251 = vpop.f32.mrb[0].mxu0
    %v252 = vadd.f32 0.0, %v251
    %v253 = vpop.f32.mrb[0].mxu0
    %254 = vmatprep.mubr.f32.mxu0 0.0
    %255 = vmatmul.mubr.f32.gmra.mrb[0].mxu0 %v127
    %v256 = vpop.f32.mrb[0].mxu0
    %v257 = vadd.f32 0.0, %v256
    %v258 = vpop.f32.mrb[0].mxu0
    %259 = vmatprep.mubr.f32.mxu0 0.0
    %260 = vmatmul.mubr.f32.gmra.mrb[0].mxu0 %v129
    %v261 = vpop.f32.mrb[0].mxu0
    %v262 = vadd.f32 0.0, %v261
    %v263 = vpop.f32.mrb[0].mxu0
    %264 = vmatprep.mubr.f32.mxu0 0.0
    %265 = vmatmul.mubr.f32.gmra.mrb[0].mxu0 %v131
    %v266 = vpop.f32.mrb[0].mxu0
    %v267 = vadd.f32 0.0, %v266
    %v268 = vpop.f32.mrb[0].mxu0
    %269 = vmatprep.mubr.f32.mxu0 0.0
    %270 = vmatmul.mubr.f32.gmra.mrb[0].mxu0 %v133
    %v271 = vpop.f32.mrb[0].mxu0
    %v272 = vadd.f32 0.0, %v271
    %v273 = vpop.f32.mrb[0].mxu0
    %274 = vmatprep.mubr.f32.mxu0 0.0
    %275 = vmatmul.mubr.f32.gmra.mrb[0].mxu0 %v135
    %v276 = vpop.f32.mrb[0].mxu0
    %v277 = vadd.f32 0.0, %v276
    %v278 = vpop.f32.mrb[0].mxu0
    %279 = vmatprep.mubr.f32.mxu0 0.0
    %280 = vmatmul.mubr.f32.gmra.mrb[0].mxu0 %v137
    %v281 = vpop.f32.mrb[0].mxu0
    %v282 = vadd.f32 0.0, %v281
    %v283 = vpop.f32.mrb[0].mxu0
    %284 = vmatprep.mubr.f32.mxu0 0.0
    %285 = vmatmul.mubr.f32.gmra.mrb[0].mxu0 %v139
    %v286 = vpop.f32.mrb[0].mxu0
    %v287 = vadd.f32 0.0, %v286
    %v288 = vpop.f32.mrb[0].mxu0
    %289 = vdwg.mxu0
    %v290 = vsel %vm108, %v16, 0
    %v292 = vsel %vm108, %v17, 0
    %v294 = vsel %vm108, %v19, 0
    %v296 = vsel %vm108, %v20, 0
    %v298 = vsel %vm108, %v22, 0
    %v300 = vsel %vm108, %v23, 0
    %v302 = vsel %vm108, %v25, 0
    %v304 = vsel %vm108, %v26, 0
    %v306 = vsel %vm108, %v28, 0
    %v308 = vsel %vm108, %v29, 0
    %v310 = vsel %vm108, %v31, 0
    %v312 = vsel %vm108, %v32, 0
    %v314 = vsel %vm108, %v34, 0
    %v316 = vsel %vm108, %v35, 0
    %v318 = vsel %vm108, %v37, 0
    %v320 = vsel %vm108, %v38, 0
    %v323 = vsel %vm141, %v40, 0
    %325 = vmatprep.subr.mxu0 0.0
    %326 = vmatpush1.msra.mxu0 %v323
    %327 = vmatprep.subr.mxu0 0.0
    %328 = vmatpush1.msra.mxu0 0.0
    %329 = vmatprep.subr.mxu0 0.0
    %330 = vmatpush1.msra.mxu0 0.0
    %331 = vmatprep.subr.mxu0 0.0
    %332 = vmatpush1.msra.mxu0 0.0
    %333 = vmatprep.subr.mxu0 0.0
    %334 = vmatpush1.msra.mxu0 0.0
    %335 = vmatprep.subr.mxu0 0.0
    %336 = vmatpush1.msra.mxu0 0.0
    %337 = vmatprep.subr.mxu0 0.0
    %338 = vmatpush1.msra.mxu0 0.0
    %339 = vmatprep.subr.mxu0 0.0
    %340 = vmatpush1.msra.mxu0 0.0
    %341 = vmatprep.subr.mxu0 0.0
    %342 = vmatpush1.msra.mxu0 0.0
    %343 = vmatprep.subr.mxu0 0.0
    %344 = vmatpush1.msra.mxu0 0.0
    %345 = vmatprep.subr.mxu0 0.0
    %346 = vmatpush1.msra.mxu0 0.0
    %347 = vmatprep.subr.mxu0 0.0
    %348 = vmatpush1.msra.mxu0 0.0
    %349 = vmatprep.subr.mxu0 0.0
    %350 = vmatpush1.msra.mxu0 0.0
    %351 = vmatprep.subr.mxu0 0.0
    %352 = vmatpush1.msra.mxu0 0.0
    %353 = vmatprep.subr.mxu0 0.0
    %354 = vmatpush1.msra.mxu0 0.0
    %355 = vmatprep.subr.mxu0 0.0
    %356 = vmatpush1.msra.mxu0 0.0
    %357 = vmatprep.subr.mxu0 0.0
    %358 = vmatpush1.msra.mxu0 0.0
    %359 = vmatprep.subr.mxu0 0.0
    %360 = vmatpush1.msra.mxu0 0.0
    %361 = vmatprep.subr.mxu0 0.0
    %362 = vmatpush1.msra.mxu0 0.0
    %363 = vmatprep.subr.mxu0 0.0
    %364 = vmatpush1.msra.mxu0 0.0
    %365 = vmatprep.subr.mxu0 0.0
    %366 = vmatpush1.msra.mxu0 0.0
    %367 = vmatprep.subr.mxu0 0.0
    %368 = vmatpush1.msra.mxu0 0.0
    %369 = vmatprep.subr.mxu0 0.0
    %370 = vmatpush1.msra.mxu0 0.0
    %371 = vmatprep.subr.mxu0 0.0
    %372 = vmatpush1.msra.mxu0 0.0
    %373 = vmatprep.subr.mxu0 0.0
    %374 = vmatpush1.msra.mxu0 0.0
    %375 = vmatprep.subr.mxu0 0.0
    %376 = vmatpush1.msra.mxu0 0.0
    %377 = vmatprep.subr.mxu0 0.0
    %378 = vmatpush1.msra.mxu0 0.0
    %379 = vmatprep.subr.mxu0 0.0
    %380 = vmatpush1.msra.mxu0 0.0
    %381 = vmatprep.subr.mxu0 0.0
    %382 = vmatpush1.msra.mxu0 0.0
    %383 = vmatprep.subr.mxu0 0.0
    %384 = vmatpush1.msra.mxu0 0.0
    %385 = vmatprep.subr.mxu0 0.0
    %386 = vmatpush1.msra.mxu0 0.0
    %387 = vmatprep.subr.mxu0 0.0
    %388 = vmatpush1.msra.mxu0 0.0
    %389 = vmatprep.mubr.f32.mxu0 0.0
    %390 = vmatmul.mubr.f32.gmra.mrb[0].mxu0 %v290
    %v391 = vpop.f32.mrb[0].mxu0
    %v392 = vadd.f32 %v212, %v391
    %v393 = vpop.f32.mrb[0].mxu0
    %394 = vmatprep.mubr.f32.mxu0 0.0
    %395 = vmatmul.mubr.f32.gmra.mrb[0].mxu0 %v292
    %v396 = vpop.f32.mrb[0].mxu0
    %v397 = vadd.f32 %v217, %v396
    %v398 = vpop.f32.mrb[0].mxu0
    %399 = vmatprep.mubr.f32.mxu0 0.0
    %400 = vmatmul.mubr.f32.gmra.mrb[0].mxu0 %v294
    %v401 = vpop.f32.mrb[0].mxu0
    %v402 = vadd.f32 %v222, %v401
    %v403 = vpop.f32.mrb[0].mxu0
    %404 = vmatprep.mubr.f32.mxu0 0.0
    %405 = vmatmul.mubr.f32.gmra.mrb[0].mxu0 %v296
    %v406 = vpop.f32.mrb[0].mxu0
    %v407 = vadd.f32 %v227, %v406
    %v408 = vpop.f32.mrb[0].mxu0
    %409 = vmatprep.mubr.f32.mxu0 0.0
    %410 = vmatmul.mubr.f32.gmra.mrb[0].mxu0 %v298
    %v411 = vpop.f32.mrb[0].mxu0
    %v412 = vadd.f32 %v232, %v411
    %v413 = vpop.f32.mrb[0].mxu0
    %414 = vmatprep.mubr.f32.mxu0 0.0
    %415 = vmatmul.mubr.f32.gmra.mrb[0].mxu0 %v300
    %v416 = vpop.f32.mrb[0].mxu0
    %v417 = vadd.f32 %v237, %v416
    %v418 = vpop.f32.mrb[0].mxu0
    %419 = vmatprep.mubr.f32.mxu0 0.0
    %420 = vmatmul.mubr.f32.gmra.mrb[0].mxu0 %v302
    %v421 = vpop.f32.mrb[0].mxu0
    %v422 = vadd.f32 %v242, %v421
    %v423 = vpop.f32.mrb[0].mxu0
    %424 = vmatprep.mubr.f32.mxu0 0.0
    %425 = vmatmul.mubr.f32.gmra.mrb[0].mxu0 %v304
    %v426 = vpop.f32.mrb[0].mxu0
    %v427 = vadd.f32 %v247, %v426
    %v428 = vpop.f32.mrb[0].mxu0
    %429 = vmatprep.mubr.f32.mxu0 0.0
    %430 = vmatmul.mubr.f32.gmra.mrb[0].mxu0 %v306
    %v431 = vpop.f32.mrb[0].mxu0
    %v432 = vadd.f32 %v252, %v431
    %v433 = vpop.f32.mrb[0].mxu0
    %434 = vmatprep.mubr.f32.mxu0 0.0
    %435 = vmatmul.mubr.f32.gmra.mrb[0].mxu0 %v308
    %v436 = vpop.f32.mrb[0].mxu0
    %v437 = vadd.f32 %v257, %v436
    %v438 = vpop.f32.mrb[0].mxu0
    %439 = vmatprep.mubr.f32.mxu0 0.0
    %440 = vmatmul.mubr.f32.gmra.mrb[0].mxu0 %v310
    %v441 = vpop.f32.mrb[0].mxu0
    %v442 = vadd.f32 %v262, %v441
    %v443 = vpop.f32.mrb[0].mxu0
    %444 = vmatprep.mubr.f32.mxu0 0.0
    %445 = vmatmul.mubr.f32.gmra.mrb[0].mxu0 %v312
    %v446 = vpop.f32.mrb[0].mxu0
    %v447 = vadd.f32 %v267, %v446
    %v448 = vpop.f32.mrb[0].mxu0
    %449 = vmatprep.mubr.f32.mxu0 0.0
    %450 = vmatmul.mubr.f32.gmra.mrb[0].mxu0 %v314
    %v451 = vpop.f32.mrb[0].mxu0
    %v452 = vadd.f32 %v272, %v451
    %v453 = vpop.f32.mrb[0].mxu0
    %454 = vmatprep.mubr.f32.mxu0 0.0
    %455 = vmatmul.mubr.f32.gmra.mrb[0].mxu0 %v316
    %v456 = vpop.f32.mrb[0].mxu0
    %v457 = vadd.f32 %v277, %v456
    %v458 = vpop.f32.mrb[0].mxu0
    %459 = vmatprep.mubr.f32.mxu0 0.0
    %460 = vmatmul.mubr.f32.gmra.mrb[0].mxu0 %v318
    %v461 = vpop.f32.mrb[0].mxu0
    %v462 = vadd.f32 %v282, %v461
    %v463 = vpop.f32.mrb[0].mxu0
    %464 = vmatprep.mubr.f32.mxu0 0.0
    %465 = vmatmul.mubr.f32.gmra.mrb[0].mxu0 %v320
    %v466 = vpop.f32.mrb[0].mxu0
    %v467 = vadd.f32 %v287, %v466
    %v468 = vpop.f32.mrb[0].mxu0
    %469 = vdwg.mxu0
    %vm470 = vcmask 1045504
    %v471 = vrot.slane %v16, 2
    %v472 = vrot.slane %v17, 2
    %v473 = vsel %vm470, %v471, %v472
    %v474 = vrot.slane %v18, 2
    %v475 = vsel %vm470, %v472, %v474
    %v476 = vrot.slane %v19, 2
    %v477 = vrot.slane %v20, 2
    %v478 = vsel %vm470, %v476, %v477
    %v479 = vrot.slane %v21, 2
    %v480 = vsel %vm470, %v477, %v479
    %v481 = vrot.slane %v22, 2
    %v482 = vrot.slane %v23, 2
    %v483 = vsel %vm470, %v481, %v482
    %v484 = vrot.slane %v24, 2
    %v485 = vsel %vm470, %v482, %v484
    %v486 = vrot.slane %v25, 2
    %v487 = vrot.slane %v26, 2
    %v488 = vsel %vm470, %v486, %v487
    %v489 = vrot.slane %v27, 2
    %v490 = vsel %vm470, %v487, %v489
    %v491 = vrot.slane %v28, 2
    %v492 = vrot.slane %v29, 2
    %v493 = vsel %vm470, %v491, %v492
    %v494 = vrot.slane %v30, 2
    %v495 = vsel %vm470, %v492, %v494
    %v496 = vrot.slane %v31, 2
    %v497 = vrot.slane %v32, 2
    %v498 = vsel %vm470, %v496, %v497
    %v499 = vrot.slane %v33, 2
    %v500 = vsel %vm470, %v497, %v499
    %v501 = vrot.slane %v34, 2
    %v502 = vrot.slane %v35, 2
    %v503 = vsel %vm470, %v501, %v502
    %v504 = vrot.slane %v36, 2
    %v505 = vsel %vm470, %v502, %v504
    %v506 = vrot.slane %v37, 2
    %v507 = vrot.slane %v38, 2
    %v508 = vsel %vm470, %v506, %v507
    %v509 = vrot.slane %v39, 2
    %v510 = vsel %vm470, %v507, %v509
    %s511 = scalar_lea.vmem %s1, 8
    %v512 = vld [vmem:[%s511] sm:$0xf]
    %v513 = vsel %vm108, %v473, 0
    %v515 = vsel %vm108, %v475, 0
    %v517 = vsel %vm108, %v478, 0
    %v519 = vsel %vm108, %v480, 0
    %v521 = vsel %vm108, %v483, 0
    %v523 = vsel %vm108, %v485, 0
    %v525 = vsel %vm108, %v488, 0
    %v527 = vsel %vm108, %v490, 0
    %v529 = vsel %vm108, %v493, 0
    %v531 = vsel %vm108, %v495, 0
    %v533 = vsel %vm108, %v498, 0
    %v535 = vsel %vm108, %v500, 0
    %v537 = vsel %vm108, %v503, 0
    %v539 = vsel %vm108, %v505, 0
    %v541 = vsel %vm108, %v508, 0
    %v543 = vsel %vm108, %v510, 0
    %v546 = vsel %vm141, %v512, 0
    %548 = vmatprep.subr.mxu0 0.0
    %549 = vmatpush1.msra.mxu0 %v546
    %550 = vmatprep.subr.mxu0 0.0
    %551 = vmatpush1.msra.mxu0 0.0
    %552 = vmatprep.subr.mxu0 0.0
    %553 = vmatpush1.msra.mxu0 0.0
    %554 = vmatprep.subr.mxu0 0.0
    %555 = vmatpush1.msra.mxu0 0.0
    %556 = vmatprep.subr.mxu0 0.0
    %557 = vmatpush1.msra.mxu0 0.0
    %558 = vmatprep.subr.mxu0 0.0
    %559 = vmatpush1.msra.mxu0 0.0
    %560 = vmatprep.subr.mxu0 0.0
    %561 = vmatpush1.msra.mxu0 0.0
    %562 = vmatprep.subr.mxu0 0.0
    %563 = vmatpush1.msra.mxu0 0.0
    %564 = vmatprep.subr.mxu0 0.0
    %565 = vmatpush1.msra.mxu0 0.0
    %566 = vmatprep.subr.mxu0 0.0
    %567 = vmatpush1.msra.mxu0 0.0
    %568 = vmatprep.subr.mxu0 0.0
    %569 = vmatpush1.msra.mxu0 0.0
    %570 = vmatprep.subr.mxu0 0.0
    %571 = vmatpush1.msra.mxu0 0.0
    %572 = vmatprep.subr.mxu0 0.0
    %573 = vmatpush1.msra.mxu0 0.0
    %574 = vmatprep.subr.mxu0 0.0
    %575 = vmatpush1.msra.mxu0 0.0
    %576 = vmatprep.subr.mxu0 0.0
    %577 = vmatpush1.msra.mxu0 0.0
    %578 = vmatprep.subr.mxu0 0.0
    %579 = vmatpush1.msra.mxu0 0.0
    %580 = vmatprep.subr.mxu0 0.0
    %581 = vmatpush1.msra.mxu0 0.0
    %582 = vmatprep.subr.mxu0 0.0
    %583 = vmatpush1.msra.mxu0 0.0
    %584 = vmatprep.subr.mxu0 0.0
    %585 = vmatpush1.msra.mxu0 0.0
    %586 = vmatprep.subr.mxu0 0.0
    %587 = vmatpush1.msra.mxu0 0.0
    %588 = vmatprep.subr.mxu0 0.0
    %589 = vmatpush1.msra.mxu0 0.0
    %590 = vmatprep.subr.mxu0 0.0
    %591 = vmatpush1.msra.mxu0 0.0
    %592 = vmatprep.subr.mxu0 0.0
    %593 = vmatpush1.msra.mxu0 0.0
    %594 = vmatprep.subr.mxu0 0.0
    %595 = vmatpush1.msra.mxu0 0.0
    %596 = vmatprep.subr.mxu0 0.0
    %597 = vmatpush1.msra.mxu0 0.0
    %598 = vmatprep.subr.mxu0 0.0
    %599 = vmatpush1.msra.mxu0 0.0
    %600 = vmatprep.subr.mxu0 0.0
    %601 = vmatpush1.msra.mxu0 0.0
    %602 = vmatprep.subr.mxu0 0.0
    %603 = vmatpush1.msra.mxu0 0.0
    %604 = vmatprep.subr.mxu0 0.0
    %605 = vmatpush1.msra.mxu0 0.0
    %606 = vmatprep.subr.mxu0 0.0
    %607 = vmatpush1.msra.mxu0 0.0
    %608 = vmatprep.subr.mxu0 0.0
    %609 = vmatpush1.msra.mxu0 0.0
    %610 = vmatprep.subr.mxu0 0.0
    %611 = vmatpush1.msra.mxu0 0.0
    %612 = vmatprep.mubr.f32.mxu0 0.0
    %613 = vmatmul.mubr.f32.gmra.mrb[0].mxu0 %v513
    %v614 = vpop.f32.mrb[0].mxu0
    %v615 = vadd.f32 0.0, %v614
    %v616 = vpop.f32.mrb[0].mxu0
    %617 = vmatprep.mubr.f32.mxu0 0.0
    %618 = vmatmul.mubr.f32.gmra.mrb[0].mxu0 %v515
    %v619 = vpop.f32.mrb[0].mxu0
    %v620 = vadd.f32 0.0, %v619
    %v621 = vpop.f32.mrb[0].mxu0
    %622 = vmatprep.mubr.f32.mxu0 0.0
    %623 = vmatmul.mubr.f32.gmra.mrb[0].mxu0 %v517
    %v624 = vpop.f32.mrb[0].mxu0
    %v625 = vadd.f32 0.0, %v624
    %v626 = vpop.f32.mrb[0].mxu0
    %627 = vmatprep.mubr.f32.mxu0 0.0
    %628 = vmatmul.mubr.f32.gmra.mrb[0].mxu0 %v519
    %v629 = vpop.f32.mrb[0].mxu0
    %v630 = vadd.f32 0.0, %v629
    %v631 = vpop.f32.mrb[0].mxu0
    %632 = vmatprep.mubr.f32.mxu0 0.0
    %633 = vmatmul.mubr.f32.gmra.mrb[0].mxu0 %v521
    %v634 = vpop.f32.mrb[0].mxu0
    %v635 = vadd.f32 0.0, %v634
    %v636 = vpop.f32.mrb[0].mxu0
    %637 = vmatprep.mubr.f32.mxu0 0.0
    %638 = vmatmul.mubr.f32.gmra.mrb[0].mxu0 %v523
    %v639 = vpop.f32.mrb[0].mxu0
    %v640 = vadd.f32 0.0, %v639
    %v641 = vpop.f32.mrb[0].mxu0
    %642 = vmatprep.mubr.f32.mxu0 0.0
    %643 = vmatmul.mubr.f32.gmra.mrb[0].mxu0 %v525
    %v644 = vpop.f32.mrb[0].mxu0
    %v645 = vadd.f32 0.0, %v644
    %v646 = vpop.f32.mrb[0].mxu0
    %647 = vmatprep.mubr.f32.mxu0 0.0
    %648 = vmatmul.mubr.f32.gmra.mrb[0].mxu0 %v527
    %v649 = vpop.f32.mrb[0].mxu0
    %v650 = vadd.f32 0.0, %v649
    %v651 = vpop.f32.mrb[0].mxu0
    %652 = vmatprep.mubr.f32.mxu0 0.0
    %653 = vmatmul.mubr.f32.gmra.mrb[0].mxu0 %v529
    %v654 = vpop.f32.mrb[0].mxu0
    %v655 = vadd.f32 0.0, %v654
    %v656 = vpop.f32.mrb[0].mxu0
    %657 = vmatprep.mubr.f32.mxu0 0.0
    %658 = vmatmul.mubr.f32.gmra.mrb[0].mxu0 %v531
    %v659 = vpop.f32.mrb[0].mxu0
    %v660 = vadd.f32 0.0, %v659
    %v661 = vpop.f32.mrb[0].mxu0
    %662 = vmatprep.mubr.f32.mxu0 0.0
    %663 = vmatmul.mubr.f32.gmra.mrb[0].mxu0 %v533
    %v664 = vpop.f32.mrb[0].mxu0
    %v665 = vadd.f32 0.0, %v664
    %v666 = vpop.f32.mrb[0].mxu0
    %667 = vmatprep.mubr.f32.mxu0 0.0
    %668 = vmatmul.mubr.f32.gmra.mrb[0].mxu0 %v535
    %v669 = vpop.f32.mrb[0].mxu0
    %v670 = vadd.f32 0.0, %v669
    %v671 = vpop.f32.mrb[0].mxu0
    %672 = vmatprep.mubr.f32.mxu0 0.0
    %673 = vmatmul.mubr.f32.gmra.mrb[0].mxu0 %v537
    %v674 = vpop.f32.mrb[0].mxu0
    %v675 = vadd.f32 0.0, %v674
    %v676 = vpop.f32.mrb[0].mxu0
    %677 = vmatprep.mubr.f32.mxu0 0.0
    %678 = vmatmul.mubr.f32.gmra.mrb[0].mxu0 %v539
    %v679 = vpop.f32.mrb[0].mxu0
    %v680 = vadd.f32 0.0, %v679
    %v681 = vpop.f32.mrb[0].mxu0
    %682 = vmatprep.mubr.f32.mxu0 0.0
    %683 = vmatmul.mubr.f32.gmra.mrb[0].mxu0 %v541
    %v684 = vpop.f32.mrb[0].mxu0
    %v685 = vadd.f32 0.0, %v684
    %v686 = vpop.f32.mrb[0].mxu0
    %687 = vmatprep.mubr.f32.mxu0 0.0
    %688 = vmatmul.mubr.f32.gmra.mrb[0].mxu0 %v543
    %v689 = vpop.f32.mrb[0].mxu0
    %v690 = vadd.f32 0.0, %v689
    %v691 = vpop.f32.mrb[0].mxu0
    %692 = vdwg.mxu0
    %v693 = vadd.f32 %v392, %v615
    %v694 = vadd.f32 %v397, %v620
    %v695 = vadd.f32 %v402, %v625
    %v696 = vadd.f32 %v407, %v630
    %v697 = vadd.f32 %v412, %v635
    %v698 = vadd.f32 %v417, %v640
    %v699 = vadd.f32 %v422, %v645
    %v700 = vadd.f32 %v427, %v650
    %v701 = vadd.f32 %v432, %v655
    %v702 = vadd.f32 %v437, %v660
    %v703 = vadd.f32 %v442, %v665
    %v704 = vadd.f32 %v447, %v670
    %v705 = vadd.f32 %v452, %v675
    %v706 = vadd.f32 %v457, %v680
    %v707 = vadd.f32 %v462, %v685
    %v708 = vadd.f32 %v467, %v690
    %vm709 = vcmask 1044480
    %v710 = vrot.slane %v16, 3
    %v711 = vrot.slane %v17, 3
    %v712 = vsel %vm709, %v710, %v711
    %v713 = vrot.slane %v18, 3
    %v714 = vsel %vm709, %v711, %v713
    %v715 = vrot.slane %v19, 3
    %v716 = vrot.slane %v20, 3
    %v717 = vsel %vm709, %v715, %v716
    %v718 = vrot.slane %v21, 3
    %v719 = vsel %vm709, %v716, %v718
    %v720 = vrot.slane %v22, 3
    %v721 = vrot.slane %v23, 3
    %v722 = vsel %vm709, %v720, %v721
    %v723 = vrot.slane %v24, 3
    %v724 = vsel %vm709, %v721, %v723
    %v725 = vrot.slane %v25, 3
    %v726 = vrot.slane %v26, 3
    %v727 = vsel %vm709, %v725, %v726
    %v728 = vrot.slane %v27, 3
    %v729 = vsel %vm709, %v726, %v728
    %v730 = vrot.slane %v28, 3
    %v731 = vrot.slane %v29, 3
    %v732 = vsel %vm709, %v730, %v731
    %v733 = vrot.slane %v30, 3
    %v734 = vsel %vm709, %v731, %v733
    %v735 = vrot.slane %v31, 3
    %v736 = vrot.slane %v32, 3
    %v737 = vsel %vm709, %v735, %v736
    %v738 = vrot.slane %v33, 3
    %v739 = vsel %vm709, %v736, %v738
    %v740 = vrot.slane %v34, 3
    %v741 = vrot.slane %v35, 3
    %v742 = vsel %vm709, %v740, %v741
    %v743 = vrot.slane %v36, 3
    %v744 = vsel %vm709, %v741, %v743
    %v745 = vrot.slane %v37, 3
    %v746 = vrot.slane %v38, 3
    %v747 = vsel %vm709, %v745, %v746
    %v748 = vrot.slane %v39, 3
    %v749 = vsel %vm709, %v746, %v748
    %s750 = scalar_lea.vmem %s1, 12
    %v751 = vld [vmem:[%s750] sm:$0xf]
    %v752 = vsel %vm108, %v712, 0
    %v754 = vsel %vm108, %v714, 0
    %v756 = vsel %vm108, %v717, 0
    %v758 = vsel %vm108, %v719, 0
    %v760 = vsel %vm108, %v722, 0
    %v762 = vsel %vm108, %v724, 0
    %v764 = vsel %vm108, %v727, 0
    %v766 = vsel %vm108, %v729, 0
    %v768 = vsel %vm108, %v732, 0
    %v770 = vsel %vm108, %v734, 0
    %v772 = vsel %vm108, %v737, 0
    %v774 = vsel %vm108, %v739, 0
    %v776 = vsel %vm108, %v742, 0
    %v778 = vsel %vm108, %v744, 0
    %v780 = vsel %vm108, %v747, 0
    %v782 = vsel %vm108, %v749, 0
    %v785 = vsel %vm141, %v751, 0
    %787 = vmatprep.subr.mxu0 0.0
    %788 = vmatpush1.msra.mxu0 %v785
    %789 = vmatprep.subr.mxu0 0.0
    %790 = vmatpush1.msra.mxu0 0.0
    %791 = vmatprep.subr.mxu0 0.0
    %792 = vmatpush1.msra.mxu0 0.0
    %793 = vmatprep.subr.mxu0 0.0
    %794 = vmatpush1.msra.mxu0 0.0
    %795 = vmatprep.subr.mxu0 0.0
    %796 = vmatpush1.msra.mxu0 0.0
    %797 = vmatprep.subr.mxu0 0.0
    %798 = vmatpush1.msra.mxu0 0.0
    %799 = vmatprep.subr.mxu0 0.0
    %800 = vmatpush1.msra.mxu0 0.0
    %801 = vmatprep.subr.mxu0 0.0
    %802 = vmatpush1.msra.mxu0 0.0
    %803 = vmatprep.subr.mxu0 0.0
    %804 = vmatpush1.msra.mxu0 0.0
    %805 = vmatprep.subr.mxu0 0.0
    %806 = vmatpush1.msra.mxu0 0.0
    %807 = vmatprep.subr.mxu0 0.0
    %808 = vmatpush1.msra.mxu0 0.0
    %809 = vmatprep.subr.mxu0 0.0
    %810 = vmatpush1.msra.mxu0 0.0
    %811 = vmatprep.subr.mxu0 0.0
    %812 = vmatpush1.msra.mxu0 0.0
    %813 = vmatprep.subr.mxu0 0.0
    %814 = vmatpush1.msra.mxu0 0.0
    %815 = vmatprep.subr.mxu0 0.0
    %816 = vmatpush1.msra.mxu0 0.0
    %817 = vmatprep.subr.mxu0 0.0
    %818 = vmatpush1.msra.mxu0 0.0
    %819 = vmatprep.subr.mxu0 0.0
    %820 = vmatpush1.msra.mxu0 0.0
    %821 = vmatprep.subr.mxu0 0.0
    %822 = vmatpush1.msra.mxu0 0.0
    %823 = vmatprep.subr.mxu0 0.0
    %824 = vmatpush1.msra.mxu0 0.0
    %825 = vmatprep.subr.mxu0 0.0
    %826 = vmatpush1.msra.mxu0 0.0
    %827 = vmatprep.subr.mxu0 0.0
    %828 = vmatpush1.msra.mxu0 0.0
    %829 = vmatprep.subr.mxu0 0.0
    %830 = vmatpush1.msra.mxu0 0.0
    %831 = vmatprep.subr.mxu0 0.0
    %832 = vmatpush1.msra.mxu0 0.0
    %833 = vmatprep.subr.mxu0 0.0
    %834 = vmatpush1.msra.mxu0 0.0
    %835 = vmatprep.subr.mxu0 0.0
    %836 = vmatpush1.msra.mxu0 0.0
    %837 = vmatprep.subr.mxu0 0.0
    %838 = vmatpush1.msra.mxu0 0.0
    %839 = vmatprep.subr.mxu0 0.0
    %840 = vmatpush1.msra.mxu0 0.0
    %841 = vmatprep.subr.mxu0 0.0
    %842 = vmatpush1.msra.mxu0 0.0
    %843 = vmatprep.subr.mxu0 0.0
    %844 = vmatpush1.msra.mxu0 0.0
    %845 = vmatprep.subr.mxu0 0.0
    %846 = vmatpush1.msra.mxu0 0.0
    %847 = vmatprep.subr.mxu0 0.0
    %848 = vmatpush1.msra.mxu0 0.0
    %849 = vmatprep.subr.mxu0 0.0
    %850 = vmatpush1.msra.mxu0 0.0
    %851 = vmatprep.mubr.f32.mxu0 0.0
    %852 = vmatmul.mubr.f32.gmra.mrb[0].mxu0 %v752
    %v853 = vpop.f32.mrb[0].mxu0
    %v854 = vadd.f32 0.0, %v853
    %v855 = vpop.f32.mrb[0].mxu0
    %856 = vmatprep.mubr.f32.mxu0 0.0
    %857 = vmatmul.mubr.f32.gmra.mrb[0].mxu0 %v754
    %v858 = vpop.f32.mrb[0].mxu0
    %v859 = vadd.f32 0.0, %v858
    %v860 = vpop.f32.mrb[0].mxu0
    %861 = vmatprep.mubr.f32.mxu0 0.0
    %862 = vmatmul.mubr.f32.gmra.mrb[0].mxu0 %v756
    %v863 = vpop.f32.mrb[0].mxu0
    %v864 = vadd.f32 0.0, %v863
    %v865 = vpop.f32.mrb[0].mxu0
    %866 = vmatprep.mubr.f32.mxu0 0.0
    %867 = vmatmul.mubr.f32.gmra.mrb[0].mxu0 %v758
    %v868 = vpop.f32.mrb[0].mxu0
    %v869 = vadd.f32 0.0, %v868
    %v870 = vpop.f32.mrb[0].mxu0
    %871 = vmatprep.mubr.f32.mxu0 0.0
    %872 = vmatmul.mubr.f32.gmra.mrb[0].mxu0 %v760
    %v873 = vpop.f32.mrb[0].mxu0
    %v874 = vadd.f32 0.0, %v873
    %v875 = vpop.f32.mrb[0].mxu0
    %876 = vmatprep.mubr.f32.mxu0 0.0
    %877 = vmatmul.mubr.f32.gmra.mrb[0].mxu0 %v762
    %v878 = vpop.f32.mrb[0].mxu0
    %v879 = vadd.f32 0.0, %v878
    %v880 = vpop.f32.mrb[0].mxu0
    %881 = vmatprep.mubr.f32.mxu0 0.0
    %882 = vmatmul.mubr.f32.gmra.mrb[0].mxu0 %v764
    %v883 = vpop.f32.mrb[0].mxu0
    %v884 = vadd.f32 0.0, %v883
    %v885 = vpop.f32.mrb[0].mxu0
    %886 = vmatprep.mubr.f32.mxu0 0.0
    %887 = vmatmul.mubr.f32.gmra.mrb[0].mxu0 %v766
    %v888 = vpop.f32.mrb[0].mxu0
    %v889 = vadd.f32 0.0, %v888
    %v890 = vpop.f32.mrb[0].mxu0
    %891 = vmatprep.mubr.f32.mxu0 0.0
    %892 = vmatmul.mubr.f32.gmra.mrb[0].mxu0 %v768
    %v893 = vpop.f32.mrb[0].mxu0
    %v894 = vadd.f32 0.0, %v893
    %v895 = vpop.f32.mrb[0].mxu0
    %896 = vmatprep.mubr.f32.mxu0 0.0
    %897 = vmatmul.mubr.f32.gmra.mrb[0].mxu0 %v770
    %v898 = vpop.f32.mrb[0].mxu0
    %v899 = vadd.f32 0.0, %v898
    %v900 = vpop.f32.mrb[0].mxu0
    %901 = vmatprep.mubr.f32.mxu0 0.0
    %902 = vmatmul.mubr.f32.gmra.mrb[0].mxu0 %v772
    %v903 = vpop.f32.mrb[0].mxu0
    %v904 = vadd.f32 0.0, %v903
    %v905 = vpop.f32.mrb[0].mxu0
    %906 = vmatprep.mubr.f32.mxu0 0.0
    %907 = vmatmul.mubr.f32.gmra.mrb[0].mxu0 %v774
    %v908 = vpop.f32.mrb[0].mxu0
    %v909 = vadd.f32 0.0, %v908
    %v910 = vpop.f32.mrb[0].mxu0
    %911 = vmatprep.mubr.f32.mxu0 0.0
    %912 = vmatmul.mubr.f32.gmra.mrb[0].mxu0 %v776
    %v913 = vpop.f32.mrb[0].mxu0
    %v914 = vadd.f32 0.0, %v913
    %v915 = vpop.f32.mrb[0].mxu0
    %916 = vmatprep.mubr.f32.mxu0 0.0
    %917 = vmatmul.mubr.f32.gmra.mrb[0].mxu0 %v778
    %v918 = vpop.f32.mrb[0].mxu0
    %v919 = vadd.f32 0.0, %v918
    %v920 = vpop.f32.mrb[0].mxu0
    %921 = vmatprep.mubr.f32.mxu0 0.0
    %922 = vmatmul.mubr.f32.gmra.mrb[0].mxu0 %v780
    %v923 = vpop.f32.mrb[0].mxu0
    %v924 = vadd.f32 0.0, %v923
    %v925 = vpop.f32.mrb[0].mxu0
    %926 = vmatprep.mubr.f32.mxu0 0.0
    %927 = vmatmul.mubr.f32.gmra.mrb[0].mxu0 %v782
    %v928 = vpop.f32.mrb[0].mxu0
    %v929 = vadd.f32 0.0, %v928
    %v930 = vpop.f32.mrb[0].mxu0
    %931 = vdwg.mxu0
    %v932 = vadd.f32 %v693, %v854
    %v933 = vadd.f32 %v694, %v859
    %v934 = vadd.f32 %v695, %v864
    %v935 = vadd.f32 %v696, %v869
    %v936 = vadd.f32 %v697, %v874
    %v937 = vadd.f32 %v698, %v879
    %v938 = vadd.f32 %v699, %v884
    %v939 = vadd.f32 %v700, %v889
    %v940 = vadd.f32 %v701, %v894
    %v941 = vadd.f32 %v702, %v899
    %v942 = vadd.f32 %v703, %v904
    %v943 = vadd.f32 %v704, %v909
    %v944 = vadd.f32 %v705, %v914
    %v945 = vadd.f32 %v706, %v919
    %v946 = vadd.f32 %v707, %v924
    %v947 = vadd.f32 %v708, %v929
    %v948 = vrot.slane %v16, 4
    %v949 = vrot.slane %v17, 4
    %v950 = vsel %vm141, %v948, %v949
    %v951 = vrot.slane %v18, 4
    %v952 = vsel %vm141, %v949, %v951
    %v953 = vrot.slane %v19, 4
    %v954 = vrot.slane %v20, 4
    %v955 = vsel %vm141, %v953, %v954
    %v956 = vrot.slane %v21, 4
    %v957 = vsel %vm141, %v954, %v956
    %v958 = vrot.slane %v22, 4
    %v959 = vrot.slane %v23, 4
    %v960 = vsel %vm141, %v958, %v959
    %v961 = vrot.slane %v24, 4
    %v962 = vsel %vm141, %v959, %v961
    %v963 = vrot.slane %v25, 4
    %v964 = vrot.slane %v26, 4
    %v965 = vsel %vm141, %v963, %v964
    %v966 = vrot.slane %v27, 4
    %v967 = vsel %vm141, %v964, %v966
    %v968 = vrot.slane %v28, 4
    %v969 = vrot.slane %v29, 4
    %v970 = vsel %vm141, %v968, %v969
    %v971 = vrot.slane %v30, 4
    %v972 = vsel %vm141, %v969, %v971
    %v973 = vrot.slane %v31, 4
    %v974 = vrot.slane %v32, 4
    %v975 = vsel %vm141, %v973, %v974
    %v976 = vrot.slane %v33, 4
    %v977 = vsel %vm141, %v974, %v976
    %v978 = vrot.slane %v34, 4
    %v979 = vrot.slane %v35, 4
    %v980 = vsel %vm141, %v978, %v979
    %v981 = vrot.slane %v36, 4
    %v982 = vsel %vm141, %v979, %v981
    %v983 = vrot.slane %v37, 4
    %v984 = vrot.slane %v38, 4
    %v985 = vsel %vm141, %v983, %v984
    %v986 = vrot.slane %v39, 4
    %v987 = vsel %vm141, %v984, %v986
    %s988 = scalar_lea.vmem %s1, 16
    %v989 = vld [vmem:[%s988] sm:$0xf]
    %v990 = vsel %vm108, %v950, 0
    %v992 = vsel %vm108, %v952, 0
    %v994 = vsel %vm108, %v955, 0
    %v996 = vsel %vm108, %v957, 0
    %v998 = vsel %vm108, %v960, 0
    %v1000 = vsel %vm108, %v962, 0
    %v1002 = vsel %vm108, %v965, 0
    %v1004 = vsel %vm108, %v967, 0
    %v1006 = vsel %vm108, %v970, 0
    %v1008 = vsel %vm108, %v972, 0
    %v1010 = vsel %vm108, %v975, 0
    %v1012 = vsel %vm108, %v977, 0
    %v1014 = vsel %vm108, %v980, 0
    %v1016 = vsel %vm108, %v982, 0
    %v1018 = vsel %vm108, %v985, 0
    %v1020 = vsel %vm108, %v987, 0
    %v1023 = vsel %vm141, %v989, 0
    %1025 = vmatprep.subr.mxu0 0.0
    %1026 = vmatpush1.msra.mxu0 %v1023
    %1027 = vmatprep.subr.mxu0 0.0
    %1028 = vmatpush1.msra.mxu0 0.0
    %1029 = vmatprep.subr.mxu0 0.0
    %1030 = vmatpush1.msra.mxu0 0.0
    %1031 = vmatprep.subr.mxu0 0.0
    %1032 = vmatpush1.msra.mxu0 0.0
    %1033 = vmatprep.subr.mxu0 0.0
    %1034 = vmatpush1.msra.mxu0 0.0
    %1035 = vmatprep.subr.mxu0 0.0
    %1036 = vmatpush1.msra.mxu0 0.0
    %1037 = vmatprep.subr.mxu0 0.0
    %1038 = vmatpush1.msra.mxu0 0.0
    %1039 = vmatprep.subr.mxu0 0.0
    %1040 = vmatpush1.msra.mxu0 0.0
    %1041 = vmatprep.subr.mxu0 0.0
    %1042 = vmatpush1.msra.mxu0 0.0
    %1043 = vmatprep.subr.mxu0 0.0
    %1044 = vmatpush1.msra.mxu0 0.0
    %1045 = vmatprep.subr.mxu0 0.0
    %1046 = vmatpush1.msra.mxu0 0.0
    %1047 = vmatprep.subr.mxu0 0.0
    %1048 = vmatpush1.msra.mxu0 0.0
    %1049 = vmatprep.subr.mxu0 0.0
    %1050 = vmatpush1.msra.mxu0 0.0
    %1051 = vmatprep.subr.mxu0 0.0
    %1052 = vmatpush1.msra.mxu0 0.0
    %1053 = vmatprep.subr.mxu0 0.0
    %1054 = vmatpush1.msra.mxu0 0.0
    %1055 = vmatprep.subr.mxu0 0.0
    %1056 = vmatpush1.msra.mxu0 0.0
    %1057 = vmatprep.subr.mxu0 0.0
    %1058 = vmatpush1.msra.mxu0 0.0
    %1059 = vmatprep.subr.mxu0 0.0
    %1060 = vmatpush1.msra.mxu0 0.0
    %1061 = vmatprep.subr.mxu0 0.0
    %1062 = vmatpush1.msra.mxu0 0.0
    %1063 = vmatprep.subr.mxu0 0.0
    %1064 = vmatpush1.msra.mxu0 0.0
    %1065 = vmatprep.subr.mxu0 0.0
    %1066 = vmatpush1.msra.mxu0 0.0
    %1067 = vmatprep.subr.mxu0 0.0
    %1068 = vmatpush1.msra.mxu0 0.0
    %1069 = vmatprep.subr.mxu0 0.0
    %1070 = vmatpush1.msra.mxu0 0.0
    %1071 = vmatprep.subr.mxu0 0.0
    %1072 = vmatpush1.msra.mxu0 0.0
    %1073 = vmatprep.subr.mxu0 0.0
    %1074 = vmatpush1.msra.mxu0 0.0
    %1075 = vmatprep.subr.mxu0 0.0
    %1076 = vmatpush1.msra.mxu0 0.0
    %1077 = vmatprep.subr.mxu0 0.0
    %1078 = vmatpush1.msra.mxu0 0.0
    %1079 = vmatprep.subr.mxu0 0.0
    %1080 = vmatpush1.msra.mxu0 0.0
    %1081 = vmatprep.subr.mxu0 0.0
    %1082 = vmatpush1.msra.mxu0 0.0
    %1083 = vmatprep.subr.mxu0 0.0
    %1084 = vmatpush1.msra.mxu0 0.0
    %1085 = vmatprep.subr.mxu0 0.0
    %1086 = vmatpush1.msra.mxu0 0.0
    %1087 = vmatprep.subr.mxu0 0.0
    %1088 = vmatpush1.msra.mxu0 0.0
    %1089 = vmatprep.mubr.f32.mxu0 0.0
    %1090 = vmatmul.mubr.f32.gmra.mrb[0].mxu0 %v990
    %v1091 = vpop.f32.mrb[0].mxu0
    %v1092 = vadd.f32 0.0, %v1091
    %v1093 = vpop.f32.mrb[0].mxu0
    %1094 = vmatprep.mubr.f32.mxu0 0.0
    %1095 = vmatmul.mubr.f32.gmra.mrb[0].mxu0 %v992
    %v1096 = vpop.f32.mrb[0].mxu0
    %v1097 = vadd.f32 0.0, %v1096
    %v1098 = vpop.f32.mrb[0].mxu0
    %1099 = vmatprep.mubr.f32.mxu0 0.0
    %1100 = vmatmul.mubr.f32.gmra.mrb[0].mxu0 %v994
    %v1101 = vpop.f32.mrb[0].mxu0
    %v1102 = vadd.f32 0.0, %v1101
    %v1103 = vpop.f32.mrb[0].mxu0
    %1104 = vmatprep.mubr.f32.mxu0 0.0
    %1105 = vmatmul.mubr.f32.gmra.mrb[0].mxu0 %v996
    %v1106 = vpop.f32.mrb[0].mxu0
    %v1107 = vadd.f32 0.0, %v1106
    %v1108 = vpop.f32.mrb[0].mxu0
    %1109 = vmatprep.mubr.f32.mxu0 0.0
    %1110 = vmatmul.mubr.f32.gmra.mrb[0].mxu0 %v998
    %v1111 = vpop.f32.mrb[0].mxu0
    %v1112 = vadd.f32 0.0, %v1111
    %v1113 = vpop.f32.mrb[0].mxu0
    %1114 = vmatprep.mubr.f32.mxu0 0.0
    %1115 = vmatmul.mubr.f32.gmra.mrb[0].mxu0 %v1000
    %v1116 = vpop.f32.mrb[0].mxu0
    %v1117 = vadd.f32 0.0, %v1116
    %v1118 = vpop.f32.mrb[0].mxu0
    %1119 = vmatprep.mubr.f32.mxu0 0.0
    %1120 = vmatmul.mubr.f32.gmra.mrb[0].mxu0 %v1002
    %v1121 = vpop.f32.mrb[0].mxu0
    %v1122 = vadd.f32 0.0, %v1121
    %v1123 = vpop.f32.mrb[0].mxu0
    %1124 = vmatprep.mubr.f32.mxu0 0.0
    %1125 = vmatmul.mubr.f32.gmra.mrb[0].mxu0 %v1004
    %v1126 = vpop.f32.mrb[0].mxu0
    %v1127 = vadd.f32 0.0, %v1126
    %v1128 = vpop.f32.mrb[0].mxu0
    %1129 = vmatprep.mubr.f32.mxu0 0.0
    %1130 = vmatmul.mubr.f32.gmra.mrb[0].mxu0 %v1006
    %v1131 = vpop.f32.mrb[0].mxu0
    %v1132 = vadd.f32 0.0, %v1131
    %v1133 = vpop.f32.mrb[0].mxu0
    %1134 = vmatprep.mubr.f32.mxu0 0.0
    %1135 = vmatmul.mubr.f32.gmra.mrb[0].mxu0 %v1008
    %v1136 = vpop.f32.mrb[0].mxu0
    %v1137 = vadd.f32 0.0, %v1136
    %v1138 = vpop.f32.mrb[0].mxu0
    %1139 = vmatprep.mubr.f32.mxu0 0.0
    %1140 = vmatmul.mubr.f32.gmra.mrb[0].mxu0 %v1010
    %v1141 = vpop.f32.mrb[0].mxu0
    %v1142 = vadd.f32 0.0, %v1141
    %v1143 = vpop.f32.mrb[0].mxu0
    %1144 = vmatprep.mubr.f32.mxu0 0.0
    %1145 = vmatmul.mubr.f32.gmra.mrb[0].mxu0 %v1012
    %v1146 = vpop.f32.mrb[0].mxu0
    %v1147 = vadd.f32 0.0, %v1146
    %v1148 = vpop.f32.mrb[0].mxu0
    %1149 = vmatprep.mubr.f32.mxu0 0.0
    %1150 = vmatmul.mubr.f32.gmra.mrb[0].mxu0 %v1014
    %v1151 = vpop.f32.mrb[0].mxu0
    %v1152 = vadd.f32 0.0, %v1151
    %v1153 = vpop.f32.mrb[0].mxu0
    %1154 = vmatprep.mubr.f32.mxu0 0.0
    %1155 = vmatmul.mubr.f32.gmra.mrb[0].mxu0 %v1016
    %v1156 = vpop.f32.mrb[0].mxu0
    %v1157 = vadd.f32 0.0, %v1156
    %v1158 = vpop.f32.mrb[0].mxu0
    %1159 = vmatprep.mubr.f32.mxu0 0.0
    %1160 = vmatmul.mubr.f32.gmra.mrb[0].mxu0 %v1018
    %v1161 = vpop.f32.mrb[0].mxu0
    %v1162 = vadd.f32 0.0, %v1161
    %v1163 = vpop.f32.mrb[0].mxu0
    %1164 = vmatprep.mubr.f32.mxu0 0.0
    %1165 = vmatmul.mubr.f32.gmra.mrb[0].mxu0 %v1020
    %v1166 = vpop.f32.mrb[0].mxu0
    %v1167 = vadd.f32 0.0, %v1166
    %v1168 = vpop.f32.mrb[0].mxu0
    %1169 = vdwg.mxu0
    %v1170 = vadd.f32 %v932, %v1092
    %v1171 = vadd.f32 %v933, %v1097
    %v1172 = vadd.f32 %v934, %v1102
    %v1173 = vadd.f32 %v935, %v1107
    %v1174 = vadd.f32 %v936, %v1112
    %v1175 = vadd.f32 %v937, %v1117
    %v1176 = vadd.f32 %v938, %v1122
    %v1177 = vadd.f32 %v939, %v1127
    %v1178 = vadd.f32 %v940, %v1132
    %v1179 = vadd.f32 %v941, %v1137
    %v1180 = vadd.f32 %v942, %v1142
    %v1181 = vadd.f32 %v943, %v1147
    %v1182 = vadd.f32 %v944, %v1152
    %v1183 = vadd.f32 %v945, %v1157
    %v1184 = vadd.f32 %v946, %v1162
    %v1185 = vadd.f32 %v947, %v1167
    %v1186 = vlaneseq
    %v1187 = vshrl.u32 %v1186, 7
    %v1188 = vadd.s32 %v1187, 8
    %vm1189 = vcmp.lt.s32.totalorder %v1187, 12
    %vm1190 = vcmp.lt.s32.totalorder %v1188, 12
    %v1191 = vsel %vm1189, %v1170, -3e+38
    %v1192 = vsel %vm1190, %v1171, -3e+38
    %v1193 = vsel %vm1189, %v1172, -3e+38
    %v1194 = vsel %vm1190, %v1173, -3e+38
    %v1195 = vsel %vm1189, %v1174, -3e+38
    %v1196 = vsel %vm1190, %v1175, -3e+38
    %v1197 = vsel %vm1189, %v1176, -3e+38
    %v1198 = vsel %vm1190, %v1177, -3e+38
    %v1199 = vsel %vm1189, %v1178, -3e+38
    %v1200 = vsel %vm1190, %v1179, -3e+38
    %v1201 = vsel %vm1189, %v1180, -3e+38
    %v1202 = vsel %vm1190, %v1181, -3e+38
    %v1203 = vsel %vm1189, %v1182, -3e+38
    %v1204 = vsel %vm1190, %v1183, -3e+38
    %v1205 = vsel %vm1189, %v1184, -3e+38
    %v1206 = vsel %vm1190, %v1185, -3e+38
    %v1207 = vmax.f32 %v1191, %v1192
    %v1208 = vrot.slane %v1207, 4
    %v1209 = vmax.f32 %v1207, %v1208
    %v1210 = vrot.slane %v1209, 2
    %v1211 = vmax.f32 %v1209, %v1210
    %v1212 = vrot.slane %v1211, 1
    %v1213 = vmax.f32 %v1211, %v1212
    %v1214 = vmax.f32 %v1193, %v1194
    %v1215 = vrot.slane %v1214, 4
    %v1216 = vmax.f32 %v1214, %v1215
    %v1217 = vrot.slane %v1216, 2
    %v1218 = vmax.f32 %v1216, %v1217
    %v1219 = vrot.slane %v1218, 1
    %v1220 = vmax.f32 %v1218, %v1219
    %v1221 = vmax.f32 %v1195, %v1196
    %v1222 = vrot.slane %v1221, 4
    %v1223 = vmax.f32 %v1221, %v1222
    %v1224 = vrot.slane %v1223, 2
    %v1225 = vmax.f32 %v1223, %v1224
    %v1226 = vrot.slane %v1225, 1
    %v1227 = vmax.f32 %v1225, %v1226
    %v1228 = vmax.f32 %v1197, %v1198
    %v1229 = vrot.slane %v1228, 4
    %v1230 = vmax.f32 %v1228, %v1229
    %v1231 = vrot.slane %v1230, 2
    %v1232 = vmax.f32 %v1230, %v1231
    %v1233 = vrot.slane %v1232, 1
    %v1234 = vmax.f32 %v1232, %v1233
    %v1235 = vmax.f32 %v1199, %v1200
    %v1236 = vrot.slane %v1235, 4
    %v1237 = vmax.f32 %v1235, %v1236
    %v1238 = vrot.slane %v1237, 2
    %v1239 = vmax.f32 %v1237, %v1238
    %v1240 = vrot.slane %v1239, 1
    %v1241 = vmax.f32 %v1239, %v1240
    %v1242 = vmax.f32 %v1201, %v1202
    %v1243 = vrot.slane %v1242, 4
    %v1244 = vmax.f32 %v1242, %v1243
    %v1245 = vrot.slane %v1244, 2
    %v1246 = vmax.f32 %v1244, %v1245
    %v1247 = vrot.slane %v1246, 1
    %v1248 = vmax.f32 %v1246, %v1247
    %v1249 = vmax.f32 %v1203, %v1204
    %v1250 = vrot.slane %v1249, 4
    %v1251 = vmax.f32 %v1249, %v1250
    %v1252 = vrot.slane %v1251, 2
    %v1253 = vmax.f32 %v1251, %v1252
    %v1254 = vrot.slane %v1253, 1
    %v1255 = vmax.f32 %v1253, %v1254
    %v1256 = vmax.f32 %v1205, %v1206
    %v1257 = vrot.slane %v1256, 4
    %v1258 = vmax.f32 %v1256, %v1257
    %v1259 = vrot.slane %v1258, 2
    %v1260 = vmax.f32 %v1258, %v1259
    %v1261 = vrot.slane %v1260, 1
    %v1262 = vmax.f32 %v1260, %v1261
    %v1264 = vlaneseq
    %v1265 = vshrl.u32 %v1264, 7
    %v1266 = vsub.s32 0, %v1265
    %v1267 = vrot.slane %v15, %v1266
    %v1269 = vadd.f32 %v1213, %v1267
    %v1270 = vadd.f32 %v1220, %v1267
    %v1271 = vadd.f32 %v1227, %v1267
    %v1272 = vadd.f32 %v1234, %v1267
    %v1273 = vadd.f32 %v1241, %v1267
    %v1274 = vadd.f32 %v1248, %v1267
    %v1275 = vadd.f32 %v1255, %v1267
    %v1276 = vadd.f32 %v1262, %v1267
    %v1277 = vmax.f32 %v1269, 0.0
    %v1278 = vmax.f32 %v1270, 0.0
    %v1279 = vmax.f32 %v1271, 0.0
    %v1280 = vmax.f32 %v1272, 0.0
    %v1281 = vmax.f32 %v1273, 0.0
    %v1282 = vmax.f32 %v1274, 0.0
    %v1283 = vmax.f32 %v1275, 0.0
    %v1284 = vmax.f32 %v1276, 0.0
    %v1293 = vrot.slane %v1278, 7
    %vm1294 = vcmask 1041409
    %v1295 = vsel %vm1294, %v1293, %v1277
    %v1296 = vrot.slane %v1279, 6
    %vm1297 = vcmask 1042434
    %v1298 = vsel %vm1297, %v1296, %v1295
    %v1299 = vrot.slane %v1280, 5
    %vm1300 = vcmask 1043459
    %v1301 = vsel %vm1300, %v1299, %v1298
    %v1302 = vrot.slane %v1281, 4
    %vm1303 = vcmask 1044484
    %v1304 = vsel %vm1303, %v1302, %v1301
    %v1305 = vrot.slane %v1282, 3
    %vm1306 = vcmask 1045509
    %v1307 = vsel %vm1306, %v1305, %v1304
    %v1308 = vrot.slane %v1283, 2
    %vm1309 = vcmask 1046534
    %v1310 = vsel %vm1309, %v1308, %v1307
    %v1311 = vrot.slane %v1284, 1
    %vm1312 = vcmask 1047559
    %v1313 = vsel %vm1312, %v1311, %v1310
    %1315 = vst [vmem:[#allocation2] sm:$0xff] %v1313
    // Predicated region
    $region14: #{tpu_custom_call.1} parent=1 // pred_check
      _
    $region15: #{tpu_custom_call.1} parent=1 // pred_check_branch
      %1317 = sbr.rel (0) target = $region17
    $region16: #{tpu_custom_call.1} parent=1 // pred_region
      %s1319 = ssub.s32 128, 128
      %1320 = vsyncadd [#allocation3], %s1319
      %s1322 = sshll.u32 [#allocation2], 4
      %s1323 = int_to_ptr.vmem [resolvable:$true] %s1322
      %1325 = dma.vmem_to_hbm [thread:$0]  %s1323, 128, %s3, [#allocation3]
    $region17: #{tpu_custom_call.1} parent=1 // pred_fallthru
      _
    // Predicated region
    $region18: #{tpu_custom_call.1} parent=1 // pred_check
      _
    $region19: #{tpu_custom_call.1} parent=1 // pred_check_branch
      %1327 = sbr.rel (0) target = $region21
    $region20: #{tpu_custom_call.1} parent=1 // pred_region
      %1328 = dma.done [#allocation3], 128
    $region21: #{tpu_custom_call.1} parent=1 // pred_fallthru
      _
    %1329 = vsyncpa [#allocation3], 1

</llo_original>
